<compile_context>
chip_gen: v7x
topology: tpu7x:2x2x1
jax: 0.10.0
libtpu: 0.0.40
codegen_flags: <defaults>
</compile_context>

<pallas_src>
import jax
import jax.numpy as jnp
import numpy as np
from jax.experimental import pallas as pl
from jax.experimental.pallas import tpu as pltpu

EPS = 1e-5

# --------------------------------------------------------------------------
# pltpu.roll direction probe (one tiny kernel, cached).  We need
# result[q] = x[q + d]; the probe pins down which sign of `shift` gives that,
# so the conv tap construction is robust across jax versions.
# --------------------------------------------------------------------------
_ROLL_SIGN = None


def _get_roll_sign():
    global _ROLL_SIGN
    if _ROLL_SIGN is None:
        def _probe(x_ref, o_ref):
            o_ref[...] = pltpu.roll(x_ref[...], 1, axis=1)

        x = jax.lax.broadcasted_iota(jnp.float32, (8, 128), 1)
        y = pl.pallas_call(
            _probe, out_shape=jax.ShapeDtypeStruct((8, 128), jnp.float32))(x)
        # jnp.roll convention: y[0,0] == 127  -> use shift = -d
        # opposite convention: y[0,0] == 1    -> use shift = +d
        _ROLL_SIGN = -1 if float(y[0, 0]) > 64.0 else 1
    return _ROLL_SIGN


# --------------------------------------------------------------------------
# In-kernel helpers
# --------------------------------------------------------------------------
def _conv_taps(x, wmat, shifts, H, W, roll_sign):
    """im2col-free 'same' conv on a flattened (C, H*W) activation.

    x:     (Cin, H*W) float32, Cin % 8 == 0
    wmat:  (Cout, len(shifts)*Cin) float32, tap-major then channel
    Each tap (dh, dw) is an XLU roll of the flat lane axis by dh*W + dw plus a
    boundary mask (== zero padding).  All taps are stacked (sublane-aligned)
    and hit the MXU once.
    """
    cin, hw = x.shape
    lane = jax.lax.broadcasted_iota(jnp.int32, (1, hw), 1)
    hh = lane // W
    ww = lane - hh * W
    taps = []
    for dh, dw in shifts:
        d = dh * W + dw
        t = x if d == 0 else pltpu.roll(x, (roll_sign * d) % hw, axis=1)
        if dh != 0 or dw != 0:
            valid = ((hh + dh >= 0) & (hh + dh < H) &
                     (ww + dw >= 0) & (ww + dw < W))
            t = jnp.where(valid, t, 0.0)
        taps.append(t)
    patches = jnp.concatenate(taps, axis=0)          # (T*Cin, HW)
    # DEFAULT precision (single-pass bf16 MXU), f32 accumulate.
    return jnp.dot(wmat, patches, preferred_element_type=jnp.float32)


def _instance_norm(y):
    """Affine-free InstanceNorm2d, fused single-pass stats (biased variance)."""
    mean = jnp.mean(y, axis=-1, keepdims=True)
    msq = jnp.mean(y * y, axis=-1, keepdims=True)
    var = jnp.maximum(msq - mean * mean, 0.0)
    return (y - mean) * jax.lax.rsqrt(var + EPS)


def _make_conv_block_kernel(shifts, H, W, relu, roll_sign):
    def kernel(x_ref, w_ref, o_ref):
        x = x_ref[...].astype(jnp.float32)           # (Cin, HW)
        y = _conv_taps(x, w_ref[...].astype(jnp.float32),
                       shifts, H, W, roll_sign)      # (Cout, HW)
        y = _instance_norm(y)                        # conv bias cancels here
        if relu:
            y = jnp.maximum(y, 0.0)
        o_ref[...] = y.astype(o_ref.dtype)
    return kernel


def _make_resblock_kernel(shifts, H, W, roll_sign):
    def kernel(x_ref, w1_ref, w2_ref, o_ref):
        x = x_ref[...].astype(jnp.float32)           # (C, HW)
        y = _conv_taps(x, w1_ref[...].astype(jnp.float32),
                       shifts, H, W, roll_sign)
        y = jnp.maximum(_instance_norm(y), 0.0)      # block1: IN + ReLU
        y = _conv_taps(y, w2_ref[...].astype(jnp.float32),
                       shifts, H, W, roll_sign)
        y = _instance_norm(y)                        # block2: IN, no act
        o_ref[...] = (x + 0.1 * y).astype(o_ref.dtype)
    return kernel


# --------------------------------------------------------------------------
# Layer wrappers (lane-dense (N, C, H*W) pipeline blocks, grid over batch)
# --------------------------------------------------------------------------
def _batch_parallel_call(kernel, x3d, weights, weight_specs, out_c, hw):
    n = x3d.shape[0]
    c = x3d.shape[1]
    return pl.pallas_call(
        kernel,
        out_shape=jax.ShapeDtypeStruct((n, out_c, hw), x3d.dtype),
        grid_spec=pltpu.PrefetchScalarGridSpec(
            num_scalar_prefetch=0,
            grid=(n,),
            in_specs=[pl.BlockSpec((None, c, hw), lambda i: (i, 0, 0))]
                     + list(weight_specs),
            out_specs=pl.BlockSpec((None, out_c, hw), lambda i: (i, 0, 0)),
        ),
        compiler_params=pltpu.CompilerParams(
            dimension_semantics=("parallel",)),
    )(x3d, *weights)


def conv_block_same_pallas(x, w, *, relu=True):
    """Conv2dBlock: zero-pad((ks-1)//2) -> conv ks x ks stride 1 -> IN -> ReLU."""
    N, cin, H, W = x.shape
    cout, _, ks, _ = w.shape
    assert ks % 2 == 1
    pad = (ks - 1) // 2
    # channel-pad to a sublane multiple so the in-kernel tap concat is aligned
    cpad = (-cin) % 8
    if cpad:
        x = jnp.pad(x, ((0, 0), (0, cpad), (0, 0), (0, 0)))
        w = jnp.pad(w, ((0, 0), (0, cpad), (0, 0), (0, 0)))
        cin += cpad
    hw = H * W
    shifts = [(kh - pad, kw - pad) for kh in range(ks) for kw in range(ks)]
    wk = jnp.transpose(w, (0, 2, 3, 1)).reshape(cout, ks * ks * cin)
    kern = _make_conv_block_kernel(shifts, H, W, relu, _get_roll_sign())
    out = _batch_parallel_call(
        kern, x.reshape(N, cin, hw), (wk,),
        [pl.BlockSpec((cout, ks * ks * cin), lambda i: (0, 0))], cout, hw)
    return out.reshape(N, cout, H, W)


def conv_block_down_pallas(x, w, *, relu=True):
    """Conv2dBlock: zero-pad(1) -> conv 4x4 stride 2 -> IN -> ReLU.

    Rewritten as a 9-shift stride-1 conv on a space-to-depth (4*Cin) input
    (built wrapper-side: pure layout plumbing), so the roll+matmul kernel is
    reused unchanged.
    """
    N, cin, H, W = x.shape
    cout, _, kh_, kw_ = w.shape
    assert kh_ == 4 and kw_ == 4 and H % 2 == 0 and W % 2 == 0
    cpad = (-cin) % 2
    if cpad:
        x = jnp.pad(x, ((0, 0), (0, cpad), (0, 0), (0, 0)))
        w = jnp.pad(w, ((0, 0), (0, cpad), (0, 0), (0, 0)))
        cin += cpad
    Ho, Wo = H // 2, W // 2
    hw = Ho * Wo
    cin_k = 4 * cin
    # space-to-depth phases, order = (row parity, col parity): ee, eo, oe, oo
    xs = jnp.stack([x[:, :, 0::2, 0::2], x[:, :, 0::2, 1::2],
                    x[:, :, 1::2, 0::2], x[:, :, 1::2, 1::2]], axis=1)
    xs = xs.reshape(N, cin_k, hw)

    shifts = [(dh, dw) for dh in (-1, 0, 1) for dw in (-1, 0, 1)]

    def parity_shift(k):  # 4-tap axis -> (phase parity, shift on the /2 grid)
        return {0: (1, -1), 1: (0, 0), 2: (1, 0), 3: (0, 1)}[k]

    wk = jnp.zeros((cout, 9, 4, cin), w.dtype)
    for kh in range(4):
        rp, dh = parity_shift(kh)
        for kw in range(4):
            cp, dw = parity_shift(kw)
            s = (dh + 1) * 3 + (dw + 1)
            ph = rp * 2 + cp
            wk = wk.at[:, s, ph, :].set(w[:, :, kh, kw])
    wk = wk.reshape(cout, 9 * cin_k)

    kern = _make_conv_block_kernel(shifts, Ho, Wo, relu, _get_roll_sign())
    out = _batch_parallel_call(
        kern, xs, (wk,),
        [pl.BlockSpec((cout, 9 * cin_k), lambda i: (0, 0))], cout, hw)
    return out.reshape(N, cout, Ho, Wo)


def resblock_pallas(x, w1, w2):
    """Fused ResBlock: x + 0.1 * ( conv3x3-IN-ReLU -> conv3x3-IN )."""
    N, C, H, W = x.shape
    cpad = (-C) % 8
    if cpad:  # zero channels stay zero through IN/ReLU and are sliced off
        x = jnp.pad(x, ((0, 0), (0, cpad), (0, 0), (0, 0)))
        w1 = jnp.pad(w1, ((0, cpad), (0, cpad), (0, 0), (0, 0)))
        w2 = jnp.pad(w2, ((0, cpad), (0, cpad), (0, 0), (0, 0)))
    Cp = C + cpad
    hw = H * W
    shifts = [(kh - 1, kw - 1) for kh in range(3) for kw in range(3)]
    wk1 = jnp.transpose(w1, (0, 2, 3, 1)).reshape(Cp, 9 * Cp)
    wk2 = jnp.transpose(w2, (0, 2, 3, 1)).reshape(Cp, 9 * Cp)
    kern = _make_resblock_kernel(shifts, H, W, _get_roll_sign())
    out = _batch_parallel_call(
        kern, x.reshape(N, Cp, hw), (wk1, wk2),
        [pl.BlockSpec((Cp, 9 * Cp), lambda i: (0, 0)),
         pl.BlockSpec((Cp, 9 * Cp), lambda i: (0, 0))], Cp, hw)
    out = out.reshape(N, Cp, H, W)
    return out[:, :C] if cpad else out


def content_encoder_pallas(x, params):
    # Conv biases are accepted but unused: an affine-free InstanceNorm follows
    # every conv, so a per-channel bias cancels exactly in (y - mean(y)).
    hw_, _hb = params["head"]
    y = conv_block_same_pallas(x, hw_, relu=True)
    for wd, _bd in params["downs"]:
        y = conv_block_down_pallas(y, wd, relu=True)
    for w1, _b1, w2, _b2 in params["res"]:
        y = resblock_pallas(y, w1, w2)
    return y


# --------------------------------------------------------------------------
# Pure-JAX reference (f32 HIGHEST precision, biases included)
# --------------------------------------------------------------------------
def _conv_ref(x, w, b, stride, pad):
    y = jax.lax.conv_general_dilated(
        x, w, window_strides=(stride, stride),
        padding=((pad, pad), (pad, pad)),
        dimension_numbers=("NCHW", "OIHW", "NCHW"),
        precision=jax.lax.Precision.HIGHEST)
    return y + b[None, :, None, None]


def _instance_norm_ref(y):
    mean = jnp.mean(y, axis=(2, 3), keepdims=True)
    var = jnp.mean(jnp.square(y - mean), axis=(2, 3), keepdims=True)
    return (y - mean) / jnp.sqrt(var + EPS)


def content_encoder_ref(x, params):
    hw_, hb_ = params["head"]
    y = jnp.maximum(_instance_norm_ref(_conv_ref(x, hw_, hb_, 1, 3)), 0.0)
    for wd, bd in params["downs"]:
        y = jnp.maximum(_instance_norm_ref(_conv_ref(y, wd, bd, 2, 1)), 0.0)
    for w1, b1, w2, b2 in params["res"]:
        r = jnp.maximum(_instance_norm_ref(_conv_ref(y, w1, b1, 1, 1)), 0.0)
        r = _instance_norm_ref(_conv_ref(r, w2, b2, 1, 1))
        y = y + 0.1 * r
    return y


# --------------------------------------------------------------------------
if __name__ == "__main__":
    # ContentEncoder(nf_cnt=4, n_downs=1, n_res=2, norm='in', act='relu',
    #                pad='zero') on a (2, 3, 32, 32) NCHW input.
    N, C_IN, H_IN, W_IN = 2, 3, 32, 32
    NF_CNT, N_DOWNS, N_RES = 4, 1, 2

    key = jax.random.PRNGKey(0)
    key, kx = jax.random.split(key)
    x = jax.random.normal(kx, (N, C_IN, H_IN, W_IN), dtype=jnp.float32)

    nf = NF_CNT
    key, kw, kb = jax.random.split(key, 3)
    head = (0.1 * jax.random.normal(kw, (nf, C_IN, 7, 7), jnp.float32),
            0.1 * jax.random.normal(kb, (nf,), jnp.float32))
    downs = []
    for _ in range(N_DOWNS):
        key, kw, kb = jax.random.split(key, 3)
        downs.append((0.1 * jax.random.normal(kw, (2 * nf, nf, 4, 4), jnp.float32),
                      0.1 * jax.random.normal(kb, (2 * nf,), jnp.float32)))
        nf *= 2
    res = []
    for _ in range(N_RES):
        key, k1, k2, k3, k4 = jax.random.split(key, 5)
        res.append((0.1 * jax.random.normal(k1, (nf, nf, 3, 3), jnp.float32),
                    0.1 * jax.random.normal(k2, (nf,), jnp.float32),
                    0.1 * jax.random.normal(k3, (nf, nf, 3, 3), jnp.float32),
                    0.1 * jax.random.normal(k4, (nf,), jnp.float32)))
    params = {"head": head, "downs": downs, "res": res}

    out = jax.block_until_ready(content_encoder_pallas(x, params))
    ref = jax.block_until_ready(content_encoder_ref(x, params))

    # Kernel matmuls deliberately run at DEFAULT (single-pass bf16 MXU)
    # precision per the perf review; reference is f32 HIGHEST.
    np.testing.assert_allclose(np.asarray(out), np.asarray(ref),
                               rtol=3e-2, atol=3e-2)
    print("KERNEL_OK")
</pallas_src>

<mosaic_0001>
module attributes {stable_mosaic.version = 11 : i64} {
  func.func @_probe(%arg0: memref<8x128xf32, #tpu.memory_space<vmem>>, %arg1: memref<8x128xf32, #tpu.memory_space<vmem>>) attributes {dimension_semantics = [], scalar_prefetch = 0 : i64, scratch_operands = 0 : i64, tpu.core_type = #tpu.core_type<tc>} {
    %c0 = arith.constant 0 : index
    %c0_0 = arith.constant 0 : index
    %0 = vector.load %arg0[%c0, %c0_0] : memref<8x128xf32, #tpu.memory_space<vmem>>, vector<8x128xf32>
    %c1_i32 = arith.constant 1 : i32
    %1 = tpu.dynamic_rotate %0 by %c1_i32 dim 1 : vector<8x128xf32>, i32 -> vector<8x128xf32>
    %c0_1 = arith.constant 0 : index
    %c0_2 = arith.constant 0 : index
    %2 = vector.load %arg1[%c0_1, %c0_2] : memref<8x128xf32, #tpu.memory_space<vmem>>, vector<8x128xf32>
    tpu.vector_store %arg1[%c0_1, %c0_2], %1 {strides = array<i32>} : memref<8x128xf32, #tpu.memory_space<vmem>>, vector<8x128xf32>,
    return
  }
}

</mosaic_0001>

<llo_original>
// kernel: tpu_custom_call.1
$region0: #{tpu_custom_call.1}
  #allocation0 [shape = 'u32[]', space=smem, size = 0x4, offset = 0x4, fixed_abs, tag = 'smem constant byte address 0x4 - core index']
  #allocation1 [shape = 'u32[144,128]{1,0:T(1,128)}', space=vmem, size = 0x12000, scoped, tag = 'internal scratch']
  %s0 = inlined_call_operand.hbm [shape: f32[8,128], index: 0, kind: input, shape index: {}]
  %s1 = inlined_call_operand.hbm [shape: f32[8,128], index: 1, kind: output, shape index: {}]
  %s2 = sld [smem:[#allocation0]]
  $region18: #{tpu_custom_call.1} parent=0
    _
  %s4 = ssub.s32 1, %s2
  %s5 = scalar_select 0, %s4, %s2
  $region1: #{tpu_custom_call.1} parent=0
    #allocation2 [shape = 'u8[4096]{0}', space=vmem, size = 0x1000, scoped, tag = 'input window, operand 0, single buffered']
    #allocation3 [shape = 's32[1]{0}', space=sflag, size = 0x4, scoped, tag = 'scoped memory for tpu_custom_call.1']
    #allocation4 [shape = 's32[1]{0}', space=sflag, size = 0x4, scoped, tag = 'scoped memory for tpu_custom_call.1']
    #allocation5 [shape = 'u8[4096]{0}', space=vmem, size = 0x1000, scoped, tag = 'output window, operand 0, single buffered']
    %6 = vsyncpa [#allocation3], 0
    %7 = vsyncpa [#allocation4], 0
    // Predicated region
    $region2: #{tpu_custom_call.1} parent=1 // pred_check
      _
    $region3: #{tpu_custom_call.1} parent=1 // pred_check_branch
      %9 = sbr.rel (0) target = $region5
    $region4: #{tpu_custom_call.1} parent=1 // pred_region
      %s11 = ssub.s32 128, 128
      %12 = vsyncadd [#allocation3], %s11
      %s14 = sshll.u32 [#allocation2], 4
      %s15 = int_to_ptr.vmem [resolvable:$true] %s14
      %17 = dma.hbm_to_vmem [thread:$0]  %s0, 128, %s15, [#allocation3]
    $region5: #{tpu_custom_call.1} parent=1 // pred_fallthru
      _
    // Predicated region
    $region6: #{tpu_custom_call.1} parent=1 // pred_check
      _
    $region7: #{tpu_custom_call.1} parent=1 // pred_check_branch
      %19 = sbr.rel (0) target = $region9
    $region8: #{tpu_custom_call.1} parent=1 // pred_region
      %20 = dma.done [#allocation3], 128
    $region9: #{tpu_custom_call.1} parent=1 // pred_fallthru
      _
    %v21 = vld [vmem:[#allocation2] sm:$0xff]
    %22 = vrot.lane.b32.xlu0 %v21, 1
    %v23 = vpop.permute.xlu0 %22
    %24 = vst [vmem:[#allocation5] sm:$0xff] %v23
    // Predicated region
    $region10: #{tpu_custom_call.1} parent=1 // pred_check
      _
    $region11: #{tpu_custom_call.1} parent=1 // pred_check_branch
      %26 = sbr.rel (0) target = $region13
    $region12: #{tpu_custom_call.1} parent=1 // pred_region
      %s28 = ssub.s32 128, 128
      %29 = vsyncadd [#allocation4], %s28
      %s31 = sshll.u32 [#allocation5], 4
      %s32 = int_to_ptr.vmem [resolvable:$true] %s31
      %34 = dma.vmem_to_hbm [thread:$0]  %s32, 128, %s1, [#allocation4]
    $region13: #{tpu_custom_call.1} parent=1 // pred_fallthru
      _
    // Predicated region
    $region14: #{tpu_custom_call.1} parent=1 // pred_check
      _
    $region15: #{tpu_custom_call.1} parent=1 // pred_check_branch
      %36 = sbr.rel (0) target = $region17
    $region16: #{tpu_custom_call.1} parent=1 // pred_region
      %37 = dma.done [#allocation4], 128
    $region17: #{tpu_custom_call.1} parent=1 // pred_fallthru
      _
    %38 = vsyncpa [#allocation3], 1
    %39 = vsyncpa [#allocation4], 1

</llo_original>
